<compile_context>
chip_gen: v7x
topology: tpu7x:2x2x1
jax: 0.10.0
libtpu: 0.0.40
codegen_flags: <defaults>
</compile_context>

<pallas_src>
import functools

import jax
import jax.numpy as jnp
from jax.experimental import pallas as pl
from jax.experimental.pallas import tpu as pltpu


def _default_compute_dtype():
    """bf16 on chips with a native bf16 VPU (v6e/v7x+), f32 otherwise (v5e-)."""
    try:
        kind = jax.devices()[0].device_kind.lower()
    except Exception:
        return jnp.float32
    if any(old in kind for old in ("v2", "v3", "v4", "v5")):
        return jnp.float32
    if "tpu" in kind:
        return jnp.bfloat16
    return jnp.float32


def _dw_taps(x_ref, dw_ref, *, TH, K, compute_dtype):
    """Accumulate the K*K depthwise taps.

    x_ref:  (B, K, TH+K-1, W*Cin)  kw-pre-shifted, lane-folded padded rows
    dw_ref: (K*K, W*Cin)           per-tap depthwise weights tiled across W
    returns (B, TH, W*Cin) in compute_dtype.
    """
    B = x_ref.shape[0]
    WC = x_ref.shape[-1]
    acc = jnp.zeros((B, TH, WC), compute_dtype)
    for kh in range(K):
        for kw in range(K):
            # Lane-aligned ref load: static kw index + static sublane (kh) offset.
            tap = x_ref[:, kw, kh:kh + TH, :]                     # (B, TH, WC)
            w = dw_ref[kh * K + kw:kh * K + kw + 1, :]            # (1, WC)
            acc = acc + tap * w
    return acc


def _dw_kernel(x_ref, dw_ref, out_ref, *, TH, K, compute_dtype):
    acc = _dw_taps(x_ref, dw_ref, TH=TH, K=K, compute_dtype=compute_dtype)
    out_ref[...] = acc.astype(out_ref.dtype)                      # lane-dense vst


def _dwpw_kernel(x_ref, dw_ref, pw_ref, out_ref, *, TH, K, compute_dtype):
    acc = _dw_taps(x_ref, dw_ref, TH=TH, K=K, compute_dtype=compute_dtype)
    B = acc.shape[0]
    WC = acc.shape[-1]
    WCout = out_ref.shape[-1]
    # 1x1 conv as one lane-dense MXU matmul against the block-diagonal weight.
    y = jnp.dot(acc.reshape(B * TH, WC), pw_ref[...],
                preferred_element_type=jnp.float32)               # (B*TH, W*Cout)
    out_ref[...] = y.reshape(B, TH, WCout).astype(out_ref.dtype)


def _choose_h_tile(H, K, WC, itemsize):
    """Largest H tile that is a multiple of 8, divides H, keeps >= 2 tiles and
    keeps the (K-copy, haloed) per-image input slab around ~1 MiB."""
    if H % 8 != 0 or H <= 8:
        return H
    TH = 8
    while (H % (2 * TH) == 0 and H // (2 * TH) >= 2
           and K * (2 * TH + K - 1) * WC * itemsize < (1 << 20)):
        TH *= 2
    return TH


def dwsconv(x_nchw, dw_weight, pw_weight=None, *, stride=1, b_tile=8,
            compute_dtype=None):
    """Forward pass of DWSconv.

    x_nchw:    (N, Cin, H, W)
    dw_weight: (Cin, 1, K, K)        torch depthwise layout (groups=Cin, no bias)
    pw_weight: (Cout, Cin, 1, 1) or None
    returns:   (N, Cout, H, W)       (Cout == Cin if pw_weight is None)
    """
    N, Cin, H, W = x_nchw.shape
    K = dw_weight.shape[-1]
    assert dw_weight.shape == (Cin, 1, K, K)
    assert stride == 1, "only stride=1 (the module default) is implemented"
    assert K % 2 == 1, "only odd kernels with 'same' padding are implemented"
    pad = (K - 1) // 2
    if compute_dtype is None:
        compute_dtype = _default_compute_dtype()
    itemsize = jnp.dtype(compute_dtype).itemsize
    WC = W * Cin

    # ---- wrapper glue: NCHW -> lane-folded, kw-pre-shifted, H-tiled layout ----
    x = jnp.transpose(x_nchw, (0, 2, 3, 1))                        # (N, H, W, Cin)
    xpad = jnp.pad(x, ((0, 0), (pad, pad), (pad, pad), (0, 0)))    # (N, Hp, Wp, Cin)
    # kw pre-shift: tap (kh, kw) becomes a purely sublane-offset load in-kernel.
    xs = jnp.stack([xpad[:, :, kw:kw + W, :] for kw in range(K)],
                   axis=1)                                         # (N, K, Hp, W, Cin)

    TH = _choose_h_tile(H, K, WC, itemsize)
    n_h = H // TH
    THp = TH + K - 1
    # H tiles with a K-1 halo, pre-materialized so all BlockSpec indexing is Blocked.
    xt = jnp.stack([xs[:, :, h * TH:h * TH + THp] for h in range(n_h)],
                   axis=1)                                         # (N, n_h, K, THp, W, Cin)
    x_in = xt.reshape(N, n_h * K, THp, WC).astype(compute_dtype)

    # Depthwise filter -> (K*K, W*Cin): row kh*K+kw broadcasts over lane-folded rows.
    dw = jnp.transpose(dw_weight[:, 0], (1, 2, 0)).reshape(K * K, Cin)
    dw_tiled = jnp.tile(dw, (1, W)).astype(compute_dtype)

    use_pw = pw_weight is not None
    if use_pw:
        Cout = pw_weight.shape[0]
        pw = jnp.transpose(pw_weight[:, :, 0, 0], (1, 0))          # (Cin, Cout)
        # Block-diagonal 1x1 weight: pointwise on the lane-folded layout == one matmul.
        pw_big = jnp.kron(jnp.eye(W, dtype=pw.dtype), pw).astype(compute_dtype)
    else:
        Cout = Cin

    # ---- grid sizing: aim for >= ~4 steps so the pipeline can prefetch/write back ----
    min_nb = -(-4 // n_h)                               # want Nb * n_h >= ~4
    B = max(1, min(b_tile, N, max(1, N // min_nb)))
    Nb = -(-N // B)
    Npad = Nb * B
    if Npad != N:
        x_in = jnp.pad(x_in, ((0, Npad - N), (0, 0), (0, 0), (0, 0)))

    out_dtype = x_nchw.dtype
    out_shape = jax.ShapeDtypeStruct((Npad, H, W * Cout), out_dtype)

    x_spec = pl.BlockSpec((B, K, THp, WC), lambda n, h: (n, h, 0, 0))
    dw_spec = pl.BlockSpec((K * K, WC), lambda n, h: (0, 0))
    out_spec = pl.BlockSpec((B, TH, W * Cout), lambda n, h: (n, h, 0))

    # Explicit VMEM budget from the actual block footprint (x2 for double-buffering).
    x_blk = B * K * THp * WC * itemsize
    out_blk = B * TH * W * Cout * jnp.dtype(out_dtype).itemsize
    w_bytes = K * K * WC * itemsize + (WC * W * Cout * itemsize if use_pw else 0)
    need = 2 * (x_blk + out_blk) + 2 * w_bytes
    vmem_limit = int(min(64 << 20, max(8 << 20, 4 * need)))

    cparams = pltpu.CompilerParams(
        dimension_semantics=("parallel", "parallel"),
        vmem_limit_bytes=vmem_limit)

    if use_pw:
        kernel = functools.partial(_dwpw_kernel, TH=TH, K=K,
                                   compute_dtype=compute_dtype)
        in_specs = [x_spec, dw_spec,
                    pl.BlockSpec((WC, W * Cout), lambda n, h: (0, 0))]
        args = (x_in, dw_tiled, pw_big)
    else:
        kernel = functools.partial(_dw_kernel, TH=TH, K=K,
                                   compute_dtype=compute_dtype)
        in_specs = [x_spec, dw_spec]
        args = (x_in, dw_tiled)

    out_flat = pl.pallas_call(
        kernel,
        out_shape=out_shape,
        grid_spec=pltpu.PrefetchScalarGridSpec(
            num_scalar_prefetch=0,
            grid=(Nb, n_h),
            in_specs=in_specs,
            out_specs=out_spec),
        compiler_params=cparams,
    )(*args)

    out = out_flat[:N].reshape(N, H, W, Cout)
    return jnp.transpose(out, (0, 3, 1, 2))                        # back to NCHW


def _reference(x_nchw, dw_weight, pw_weight=None):
    """Pure-JAX reference matching torch Conv2d semantics (NCHW)."""
    K = dw_weight.shape[-1]
    p = (K - 1) // 2
    y = jax.lax.conv_general_dilated(
        x_nchw, dw_weight, window_strides=(1, 1),
        padding=((p, p), (p, p)),
        dimension_numbers=("NCHW", "OIHW", "NCHW"),
        feature_group_count=x_nchw.shape[1])
    if pw_weight is not None:
        y = jax.lax.conv_general_dilated(
            y, pw_weight, window_strides=(1, 1), padding="VALID",
            dimension_numbers=("NCHW", "OIHW", "NCHW"))
    return y


if __name__ == "__main__":
    # Small shapes consistent with the module: batch=2, nin=8, nout=16, 16x16 spatial.
    N, nin, nout, H, W, K = 2, 8, 16, 16, 16, 3

    key = jax.random.PRNGKey(0)
    kx, kdw, kpw = jax.random.split(key, 3)

    x = jax.random.normal(kx, (N, nin, H, W), jnp.float32)
    dw_w = jax.random.normal(kdw, (nin, 1, K, K), jnp.float32) * 0.1     # depthwise
    pw_w = jax.random.normal(kpw, (nout, nin, 1, 1), jnp.float32) * 0.1  # pointwise

    cdt = _default_compute_dtype()
    tol = 5e-2 if cdt == jnp.bfloat16 else 1e-4   # bf16 VALU/MXU path is less exact

    # pointwise=True path (depthwise 3x3 + 1x1 conv).
    out_pw = jax.block_until_ready(dwsconv(x, dw_w, pw_w))
    ref_pw = _reference(x, dw_w, pw_w)
    assert out_pw.shape == (N, nout, H, W)
    assert jnp.allclose(out_pw, ref_pw, atol=tol, rtol=tol), \
        float(jnp.max(jnp.abs(out_pw - ref_pw)))

    # pointwise=False path (depthwise only).
    out_dw = jax.block_until_ready(dwsconv(x, dw_w, None))
    ref_dw = _reference(x, dw_w, None)
    assert out_dw.shape == (N, nin, H, W)
    assert jnp.allclose(out_dw, ref_dw, atol=tol, rtol=tol), \
        float(jnp.max(jnp.abs(out_dw - ref_dw)))

    print("KERNEL_OK")
</pallas_src>

<mosaic_0001>
module attributes {stable_mosaic.version = 11 : i64} {
  func.func @_dwpw_kernel(%arg0: i32, %arg1: i32, %arg2: memref<1x3x10x128xf32, #tpu.memory_space<vmem>>, %arg3: memref<9x128xf32, #tpu.memory_space<vmem>>, %arg4: memref<128x256xf32, #tpu.memory_space<vmem>>, %arg5: memref<1x8x256xf32, #tpu.memory_space<vmem>>) attributes {dimension_semantics = [#tpu.dimension_semantics<parallel>, #tpu.dimension_semantics<parallel>], iteration_bounds = array<i64: 2, 2>, scalar_prefetch = 0 : i64, scratch_operands = 0 : i64, tpu.core_type = #tpu.core_type<tc>, window_params = [{transform_indices = @transform_0, window_bounds = array<i64: 1, 3, 10, 128>}, {pipeline_mode = #tpu.pipeline_mode<synchronous>, transform_indices = @transform_1, window_bounds = array<i64: 9, 128>}, {pipeline_mode = #tpu.pipeline_mode<synchronous>, transform_indices = @transform_2, window_bounds = array<i64: 128, 256>}, {transform_indices = @transform_3, window_bounds = array<i64: 1, 8, 256>}]} {
    %cst = arith.constant 0.000000e+00 : f32
    %0 = vector.broadcast %cst : f32 to vector<1x8x128xf32>
    %c0 = arith.constant 0 : index
    %c0_0 = arith.constant 0 : index
    %c0_1 = arith.constant 0 : index
    %c0_2 = arith.constant 0 : index
    %1 = vector.load %arg2[%c0, %c0_0, %c0_1, %c0_2] : memref<1x3x10x128xf32, #tpu.memory_space<vmem>>, vector<1x1x8x128xf32>
    %2 = vector.shape_cast %1 : vector<1x1x8x128xf32> to vector<1x8x128xf32>
    %c0_3 = arith.constant 0 : index
    %c0_4 = arith.constant 0 : index
    %3 = vector.load %arg3[%c0_3, %c0_4] : memref<9x128xf32, #tpu.memory_space<vmem>>, vector<1x128xf32>
    %4 = vector.shape_cast %3 : vector<1x128xf32> to vector<1x1x128xf32>
    %5 = vector.broadcast %4 : vector<1x1x128xf32> to vector<1x8x128xf32>
    %6 = arith.mulf %2, %5 : vector<1x8x128xf32>
    %7 = arith.addf %0, %6 : vector<1x8x128xf32>
    %c0_5 = arith.constant 0 : index
    %c1 = arith.constant 1 : index
    %c0_6 = arith.constant 0 : index
    %c0_7 = arith.constant 0 : index
    %8 = vector.load %arg2[%c0_5, %c1, %c0_6, %c0_7] : memref<1x3x10x128xf32, #tpu.memory_space<vmem>>, vector<1x1x8x128xf32>
    %9 = vector.shape_cast %8 : vector<1x1x8x128xf32> to vector<1x8x128xf32>
    %c1_8 = arith.constant 1 : index
    %c0_9 = arith.constant 0 : index
    %10 = vector.load %arg3[%c1_8, %c0_9] : memref<9x128xf32, #tpu.memory_space<vmem>>, vector<1x128xf32>
    %11 = vector.shape_cast %10 : vector<1x128xf32> to vector<1x1x128xf32>
    %12 = vector.broadcast %11 : vector<1x1x128xf32> to vector<1x8x128xf32>
    %13 = arith.mulf %9, %12 : vector<1x8x128xf32>
    %14 = arith.addf %7, %13 : vector<1x8x128xf32>
    %c0_10 = arith.constant 0 : index
    %c2 = arith.constant 2 : index
    %c0_11 = arith.constant 0 : index
    %c0_12 = arith.constant 0 : index
    %15 = vector.load %arg2[%c0_10, %c2, %c0_11, %c0_12] : memref<1x3x10x128xf32, #tpu.memory_space<vmem>>, vector<1x1x8x128xf32>
    %16 = vector.shape_cast %15 : vector<1x1x8x128xf32> to vector<1x8x128xf32>
    %c2_13 = arith.constant 2 : index
    %c0_14 = arith.constant 0 : index
    %17 = vector.load %arg3[%c2_13, %c0_14] : memref<9x128xf32, #tpu.memory_space<vmem>>, vector<1x128xf32>
    %18 = vector.shape_cast %17 : vector<1x128xf32> to vector<1x1x128xf32>
    %19 = vector.broadcast %18 : vector<1x1x128xf32> to vector<1x8x128xf32>
    %20 = arith.mulf %16, %19 : vector<1x8x128xf32>
    %21 = arith.addf %14, %20 : vector<1x8x128xf32>
    %c0_15 = arith.constant 0 : index
    %c0_16 = arith.constant 0 : index
    %c1_17 = arith.constant 1 : index
    %c0_18 = arith.constant 0 : index
    %22 = vector.load %arg2[%c0_15, %c0_16, %c1_17, %c0_18] : memref<1x3x10x128xf32, #tpu.memory_space<vmem>>, vector<1x1x8x128xf32>
    %23 = vector.shape_cast %22 : vector<1x1x8x128xf32> to vector<1x8x128xf32>
    %c3 = arith.constant 3 : index
    %c0_19 = arith.constant 0 : index
    %24 = vector.load %arg3[%c3, %c0_19] : memref<9x128xf32, #tpu.memory_space<vmem>>, vector<1x128xf32>
    %25 = vector.shape_cast %24 : vector<1x128xf32> to vector<1x1x128xf32>
    %26 = vector.broadcast %25 : vector<1x1x128xf32> to vector<1x8x128xf32>
    %27 = arith.mulf %23, %26 : vector<1x8x128xf32>
    %28 = arith.addf %21, %27 : vector<1x8x128xf32>
    %c0_20 = arith.constant 0 : index
    %c1_21 = arith.constant 1 : index
    %c1_22 = arith.constant 1 : index
    %c0_23 = arith.constant 0 : index
    %29 = vector.load %arg2[%c0_20, %c1_21, %c1_22, %c0_23] : memref<1x3x10x128xf32, #tpu.memory_space<vmem>>, vector<1x1x8x128xf32>
    %30 = vector.shape_cast %29 : vector<1x1x8x128xf32> to vector<1x8x128xf32>
    %c4 = arith.constant 4 : index
    %c0_24 = arith.constant 0 : index
    %31 = vector.load %arg3[%c4, %c0_24] : memref<9x128xf32, #tpu.memory_space<vmem>>, vector<1x128xf32>
    %32 = vector.shape_cast %31 : vector<1x128xf32> to vector<1x1x128xf32>
    %33 = vector.broadcast %32 : vector<1x1x128xf32> to vector<1x8x128xf32>
    %34 = arith.mulf %30, %33 : vector<1x8x128xf32>
    %35 = arith.addf %28, %34 : vector<1x8x128xf32>
    %c0_25 = arith.constant 0 : index
    %c2_26 = arith.constant 2 : index
    %c1_27 = arith.constant 1 : index
    %c0_28 = arith.constant 0 : index
    %36 = vector.load %arg2[%c0_25, %c2_26, %c1_27, %c0_28] : memref<1x3x10x128xf32, #tpu.memory_space<vmem>>, vector<1x1x8x128xf32>
    %37 = vector.shape_cast %36 : vector<1x1x8x128xf32> to vector<1x8x128xf32>
    %c5 = arith.constant 5 : index
    %c0_29 = arith.constant 0 : index
    %38 = vector.load %arg3[%c5, %c0_29] : memref<9x128xf32, #tpu.memory_space<vmem>>, vector<1x128xf32>
    %39 = vector.shape_cast %38 : vector<1x128xf32> to vector<1x1x128xf32>
    %40 = vector.broadcast %39 : vector<1x1x128xf32> to vector<1x8x128xf32>
    %41 = arith.mulf %37, %40 : vector<1x8x128xf32>
    %42 = arith.addf %35, %41 : vector<1x8x128xf32>
    %c0_30 = arith.constant 0 : index
    %c0_31 = arith.constant 0 : index
    %c2_32 = arith.constant 2 : index
    %c0_33 = arith.constant 0 : index
    %43 = vector.load %arg2[%c0_30, %c0_31, %c2_32, %c0_33] : memref<1x3x10x128xf32, #tpu.memory_space<vmem>>, vector<1x1x8x128xf32>
    %44 = vector.shape_cast %43 : vector<1x1x8x128xf32> to vector<1x8x128xf32>
    %c6 = arith.constant 6 : index
    %c0_34 = arith.constant 0 : index
    %45 = vector.load %arg3[%c6, %c0_34] : memref<9x128xf32, #tpu.memory_space<vmem>>, vector<1x128xf32>
    %46 = vector.shape_cast %45 : vector<1x128xf32> to vector<1x1x128xf32>
    %47 = vector.broadcast %46 : vector<1x1x128xf32> to vector<1x8x128xf32>
    %48 = arith.mulf %44, %47 : vector<1x8x128xf32>
    %49 = arith.addf %42, %48 : vector<1x8x128xf32>
    %c0_35 = arith.constant 0 : index
    %c1_36 = arith.constant 1 : index
    %c2_37 = arith.constant 2 : index
    %c0_38 = arith.constant 0 : index
    %50 = vector.load %arg2[%c0_35, %c1_36, %c2_37, %c0_38] : memref<1x3x10x128xf32, #tpu.memory_space<vmem>>, vector<1x1x8x128xf32>
    %51 = vector.shape_cast %50 : vector<1x1x8x128xf32> to vector<1x8x128xf32>
    %c7 = arith.constant 7 : index
    %c0_39 = arith.constant 0 : index
    %52 = vector.load %arg3[%c7, %c0_39] : memref<9x128xf32, #tpu.memory_space<vmem>>, vector<1x128xf32>
    %53 = vector.shape_cast %52 : vector<1x128xf32> to vector<1x1x128xf32>
    %54 = vector.broadcast %53 : vector<1x1x128xf32> to vector<1x8x128xf32>
    %55 = arith.mulf %51, %54 : vector<1x8x128xf32>
    %56 = arith.addf %49, %55 : vector<1x8x128xf32>
    %c0_40 = arith.constant 0 : index
    %c2_41 = arith.constant 2 : index
    %c2_42 = arith.constant 2 : index
    %c0_43 = arith.constant 0 : index
    %57 = vector.load %arg2[%c0_40, %c2_41, %c2_42, %c0_43] : memref<1x3x10x128xf32, #tpu.memory_space<vmem>>, vector<1x1x8x128xf32>
    %58 = vector.shape_cast %57 : vector<1x1x8x128xf32> to vector<1x8x128xf32>
    %c8 = arith.constant 8 : index
    %c0_44 = arith.constant 0 : index
    %59 = vector.load %arg3[%c8, %c0_44] : memref<9x128xf32, #tpu.memory_space<vmem>>, vector<1x128xf32>
    %60 = vector.shape_cast %59 : vector<1x128xf32> to vector<1x1x128xf32>
    %61 = vector.broadcast %60 : vector<1x1x128xf32> to vector<1x8x128xf32>
    %62 = arith.mulf %58, %61 : vector<1x8x128xf32>
    %63 = arith.addf %56, %62 : vector<1x8x128xf32>
    %64 = vector.shape_cast %63 : vector<1x8x128xf32> to vector<8x128xf32>
    %c0_45 = arith.constant 0 : index
    %c0_46 = arith.constant 0 : index
    %65 = vector.load %arg4[%c0_45, %c0_46] : memref<128x256xf32, #tpu.memory_space<vmem>>, vector<128x256xf32>
    %cst_47 = arith.constant dense<0.000000e+00> : vector<8x256xf32>
    %66 = tpu.matmul %64, %65, %cst_47 {dimension_numbers = #tpu.dot_dimension_numbers<[1], [0], [0], [1], [0, 0, 1, 1], [], []>} : vector<8x128xf32>, vector<128x256xf32>, vector<8x256xf32> -> vector<8x256xf32>
    %67 = vector.shape_cast %66 : vector<8x256xf32> to vector<1x8x256xf32>
    %c0_48 = arith.constant 0 : index
    %c0_49 = arith.constant 0 : index
    %c0_50 = arith.constant 0 : index
    %68 = vector.load %arg5[%c0_48, %c0_49, %c0_50] : memref<1x8x256xf32, #tpu.memory_space<vmem>>, vector<1x8x256xf32>
    tpu.vector_store %arg5[%c0_48, %c0_49, %c0_50], %67 {strides = array<i32>} : memref<1x8x256xf32, #tpu.memory_space<vmem>>, vector<1x8x256xf32>,
    return
  }
  func.func @transform_0(%arg0: i32, %arg1: i32) -> (i32, i32, i32, i32) {
    %c0_i32 = arith.constant 0 : i32
    %c0_i32_0 = arith.constant 0 : i32
    %c0_i32_1 = arith.constant 0 : i32
    return %arg0, %arg1, %c0_i32, %c0_i32_0 : i32, i32, i32, i32
  }
  func.func @transform_1(%arg0: i32, %arg1: i32) -> (i32, i32) {
    %c0_i32 = arith.constant 0 : i32
    %c0_i32_0 = arith.constant 0 : i32
    %c0_i32_1 = arith.constant 0 : i32
    return %c0_i32, %c0_i32_0 : i32, i32
  }
  func.func @transform_2(%arg0: i32, %arg1: i32) -> (i32, i32) {
    %c0_i32 = arith.constant 0 : i32
    %c0_i32_0 = arith.constant 0 : i32
    %c0_i32_1 = arith.constant 0 : i32
    return %c0_i32, %c0_i32_0 : i32, i32
  }
  func.func @transform_3(%arg0: i32, %arg1: i32) -> (i32, i32, i32) {
    %c0_i32 = arith.constant 0 : i32
    %c0_i32_0 = arith.constant 0 : i32
    return %arg0, %arg1, %c0_i32 : i32, i32, i32
  }
}

</mosaic_0001>

<llo_original>
// kernel: tpu_custom_call.1
$region0: #{tpu_custom_call.1}
  #allocation0 [shape = 'u32[]', space=smem, size = 0x4, offset = 0x4, fixed_abs, tag = 'smem constant byte address 0x4 - core index']
  #allocation1 [shape = 'u32[144,128]{1,0:T(1,128)}', space=vmem, size = 0x12000, scoped, tag = 'internal scratch']
  %s0 = inlined_call_operand.vmem [shape: f32[2,6,10,128], index: 0, kind: input, shape index: {}]
  %s1 = inlined_call_operand.vmem [shape: f32[9,128], index: 1, kind: input, shape index: {}]
  %s2 = inlined_call_operand.vmem [shape: f32[128,256], index: 2, kind: input, shape index: {}]
  %s3 = inlined_call_operand.hbm [shape: f32[2,16,256], index: 3, kind: output, shape index: {}]
  %s4 = sld [smem:[#allocation0]]
  $region45: #{tpu_custom_call.1} parent=0
    _
  %s6 = ssub.s32 1, %s4
  %s7 = scalar_select 0, %s6, %s4
  $region1: #{tpu_custom_call.1} parent=0
    #allocation2 [shape = 'u8[16384]{0}', space=vmem, size = 0x4000, scoped, tag = 'output window, operand 0']
    #allocation3 [shape = 's32[2]{0}', space=sflag, size = 0x8, scoped, tag = 'scoped memory for tpu_custom_call.1']
    %8 = vsyncpa [#allocation3], 0
    %s9 = scalar_lea.sflag [#allocation3], 1
    %10 = vsyncpa %s9, 0
    loop: start=0, step=1, limit=6
    $region2: #{tpu_custom_call.1} parent=1 // loop_pre_header
      _
    $region3: #{tpu_custom_call.1} parent=1 // loop_header
      %s12 = sphi 0, %s16
      %p13 = scmp.ge.s32.totalorder %s12, 6
      %s19 = sphi 0, %s31
      %s20 = sphi 0, %s27
      %s21 = sphi 0, %s19
      %s22 = sphi 0, %s20
      %s23 = sphi 0, %s21
      %s24 = sphi 0, %s22
      %s36 = sphi 0, %s38
      %s39 = sphi 0, %s36
      %s40 = sphi 0, %s39
      %s56 = sphi 0, %s40
      %s60 = sphi 0, %s60
      %s62 = sphi 0, %s60
      %s63 = sphi 0, %s62
      %s77 = sphi 0, %s63
      %s81 = sphi 0, %s81
      %s83 = sphi 0, %s81
      %s84 = sphi 0, %s83
      %s98 = sphi 0, %s84
      %s106 = sphi 0, %s108
      %s109 = sphi 0, %s106
      %s110 = sphi 0, %s109
      %s126 = sphi 0, %s110
    $region4: #{tpu_custom_call.1} parent=1 // loop_header_branch
      %15 = sbr.rel (%p13) target = $region8
    $region5: #{tpu_custom_call.1} parent=1 // loop_body
      %s17 = ssub.s32 %s12, 1
      %s18 = ssub.s32 %s12, 2
      %s25 = sadd.s32 1, %s20
      %p26 = scmp.ge.s32.totalorder %s25, 2
      %s27 = scalar_select %p26, 0, %s25
      %s28 = sadd.s32 1, %s19
      %s29 = scalar_select %p26, %s28, %s19
      %p30 = scmp.ge.s32.totalorder %s29, 2
      %s31 = scalar_select %p30, 0, %s29
      %s32 = ssub.s32 %s19, %s31
      %s33 = ssub.s32 %s20, %s27
      %s34 = sor.u32 %s32, %s33
      %p35 = scmp.eq.s32.totalorder %s34, 0
      %s37 = sadd.s32 %s36, 1
      %s38 = scalar_select %p35, %s36, %s37
      %p41 = pneg %p35
      %p42 = scmp.eq.s32.totalorder %s12, 3
      %p43 = por %p41, %p42
      %p44 = scmp.ne.s32.totalorder %s36, %s39
      %p45 = scmp.eq.s32.totalorder %s12, 0
      %p46 = por %p44, %p45
      %p47 = scmp.ne.s32.totalorder %s36, %s39
      %p48 = scmp.eq.s32.totalorder %s17, 3
      %p49 = por %p47, %p48
      %p50 = scmp.ne.s32.totalorder %s39, %s40
      %p51 = scmp.eq.s32.totalorder %s17, 0
      %p52 = por %p50, %p51
      %p53 = scmp.ne.s32.totalorder %s39, %s40
      %p54 = scmp.eq.s32.totalorder %s18, 3
      %p55 = por %p53, %p54
      %p57 = scmp.ne.s32.totalorder %s40, %s56
      %p58 = scmp.eq.s32.totalorder %s18, 0
      %p59 = por %p57, %p58
      %s61 = sadd.s32 %s60, 1
      %p64 = scmp.eq.s32.totalorder %s12, 3
      %p65 = scmp.ne.s32.totalorder %s60, %s62
      %p66 = scmp.eq.s32.totalorder %s12, 0
      %p67 = por %p65, %p66
      %p68 = scmp.ne.s32.totalorder %s60, %s62
      %p69 = scmp.eq.s32.totalorder %s17, 3
      %p70 = por %p68, %p69
      %p71 = scmp.ne.s32.totalorder %s62, %s63
      %p72 = scmp.eq.s32.totalorder %s17, 0
      %p73 = por %p71, %p72
      %p74 = scmp.ne.s32.totalorder %s62, %s63
      %p75 = scmp.eq.s32.totalorder %s18, 3
      %p76 = por %p74, %p75
      %p78 = scmp.ne.s32.totalorder %s63, %s77
      %p79 = scmp.eq.s32.totalorder %s18, 0
      %p80 = por %p78, %p79
      %s82 = sadd.s32 %s81, 1
      %p85 = scmp.eq.s32.totalorder %s12, 3
      %p86 = scmp.ne.s32.totalorder %s81, %s83
      %p87 = scmp.eq.s32.totalorder %s12, 0
      %p88 = por %p86, %p87
      %p89 = scmp.ne.s32.totalorder %s81, %s83
      %p90 = scmp.eq.s32.totalorder %s17, 3
      %p91 = por %p89, %p90
      %p92 = scmp.ne.s32.totalorder %s83, %s84
      %p93 = scmp.eq.s32.totalorder %s17, 0
      %p94 = por %p92, %p93
      %p95 = scmp.ne.s32.totalorder %s83, %s84
      %p96 = scmp.eq.s32.totalorder %s18, 3
      %p97 = por %p95, %p96
      %p99 = scmp.ne.s32.totalorder %s84, %s98
      %p100 = scmp.eq.s32.totalorder %s18, 0
      %p101 = por %p99, %p100
      %s102 = ssub.s32 %s19, %s31
      %s103 = ssub.s32 %s20, %s27
      %s104 = sor.u32 %s102, %s103
      %p105 = scmp.eq.s32.totalorder %s104, 0
      %s107 = sadd.s32 %s106, 1
      %s108 = scalar_select %p105, %s106, %s107
      %p111 = pneg %p105
      %p112 = scmp.eq.s32.totalorder %s12, 3
      %p113 = por %p111, %p112
      %p114 = scmp.ne.s32.totalorder %s106, %s109
      %p115 = scmp.eq.s32.totalorder %s12, 0
      %p116 = por %p114, %p115
      %p117 = scmp.ne.s32.totalorder %s106, %s109
      %p118 = scmp.eq.s32.totalorder %s17, 3
      %p119 = por %p117, %p118
      %p120 = scmp.ne.s32.totalorder %s109, %s110
      %p121 = scmp.eq.s32.totalorder %s17, 0
      %p122 = por %p120, %p121
      %p123 = scmp.ne.s32.totalorder %s109, %s110
      %p124 = scmp.eq.s32.totalorder %s18, 3
      %p125 = por %p123, %p124
      %p127 = scmp.ne.s32.totalorder %s110, %s126
      %p128 = scmp.eq.s32.totalorder %s18, 0
      %p129 = por %p127, %p128
      %p130 = scmp.le.s32.totalorder 1, %s12
      %p131 = scmp.lt.s32.totalorder %s12, 5
      %p132 = pnand %p130, %p131
      %p133 = pneg %p132
      // Predicated region
      $region9: #{tpu_custom_call.1} parent=5 // pred_check
        _
      $region10: #{tpu_custom_call.1} parent=5 // pred_check_branch
        %135 = sbr.rel (%p132) target = $region12
      $region11: #{tpu_custom_call.1} parent=5 // pred_region
        %s136 = ssub.s32 %s12, 1
        // Predicated region
        $region13: #{tpu_custom_call.1} parent=11 // pred_check
          %p137 = pneg %p73
        $region14: #{tpu_custom_call.1} parent=11 // pred_check_branch
          %139 = sbr.rel (%p137) target = $region16
        $region15: #{tpu_custom_call.1} parent=11 // pred_region
          _
        $region16: #{tpu_custom_call.1} parent=11 // pred_fallthru
          _
        // Predicated region
        $region17: #{tpu_custom_call.1} parent=11 // pred_check
          %p140 = pneg %p94
        $region18: #{tpu_custom_call.1} parent=11 // pred_check_branch
          %142 = sbr.rel (%p140) target = $region20
        $region19: #{tpu_custom_call.1} parent=11 // pred_region
          _
        $region20: #{tpu_custom_call.1} parent=11 // pred_fallthru
          _
      $region12: #{tpu_custom_call.1} parent=5 // pred_fallthru
        _
      %p143 = scmp.lt.s32.totalorder %s12, 4
      // Predicated region
      $region21: #{tpu_custom_call.1} parent=5 // pred_check
        %p144 = pneg %p143
      $region22: #{tpu_custom_call.1} parent=5 // pred_check_branch
        %146 = sbr.rel (%p144) target = $region24
      $region23: #{tpu_custom_call.1} parent=5 // pred_region
        // Predicated region
        $region25: #{tpu_custom_call.1} parent=23 // pred_check
          %p147 = pneg %p46
        $region26: #{tpu_custom_call.1} parent=23 // pred_check_branch
          %149 = sbr.rel (%p147) target = $region28
        $region27: #{tpu_custom_call.1} parent=23 // pred_region
          %s150 = smul.u32 3, %s20
          %p151 = scmp.lt.s32.totalorder %s19, 1
          %s152 = scalar_select %p151, %s19, 1
          %p153 = scmp.lt.s32.totalorder %s150, 5
          %s154 = scalar_select %p153, %s150, 5
          %s155 = smul.addr %s154, 2
          %s156 = smul.addr %s152, 12
          %s157 = sadd.s32 %s155, %s156
          %s158 = smul.addr %s157, 8
          %s159 = scalar_lea.vmem %s0, %s158
          %s160 = smul.u32 3, %s20
        $region28: #{tpu_custom_call.1} parent=23 // pred_fallthru
          _
      $region24: #{tpu_custom_call.1} parent=5 // pred_fallthru
        _
      %p161 = scmp.le.s32.totalorder 1, %s12
      %p162 = scmp.lt.s32.totalorder %s12, 5
      %p163 = pnand %p161, %p162
      %p164 = pneg %p163
      // Predicated region
      $region29: #{tpu_custom_call.1} parent=5 // pred_check
        _
      $region30: #{tpu_custom_call.1} parent=5 // pred_check_branch
        %166 = sbr.rel (%p163) target = $region32
      $region31: #{tpu_custom_call.1} parent=5 // pred_region
        %s167 = ssub.s32 %s12, 1
        %s168 = smul.u32 3, %s22
        %p169 = scmp.lt.s32.totalorder %s21, 1
        %s170 = scalar_select %p169, %s21, 1
        %p171 = scmp.lt.s32.totalorder %s168, 5
        %s172 = scalar_select %p171, %s168, 5
        %s173 = smul.addr %s172, 2
        %s174 = smul.addr %s170, 12
        %s175 = sadd.s32 %s173, %s174
        %s176 = smul.addr %s175, 8
        %s177 = scalar_lea.vmem %s0, %s176
        %p178 = pneg %p52
        %p179 = pneg %p49
        %p180 = pneg %p73
        %p181 = pneg %p70
        %p182 = pneg %p94
        %p183 = pneg %p91
        %p184 = pneg %p122
        %p185 = pneg %p119
        %s186 = sand.u32 %s109, 1
        %s187 = scalar_lea.sflag [#allocation3], %s186
        %s188 = sand.u32 %s109, 1
        %s189 = smul.addr %s188, 16
        %s190 = scalar_lea.vmem [#allocation2], %s189
        %s191 = smul.u32 3, %s22
        %p192 = scmp.lt.s32.totalorder %s21, 1
        %s193 = scalar_select %p192, %s21, 1
        %p194 = scmp.lt.s32.totalorder %s191, 5
        %s195 = scalar_select %p194, %s191, 5
        %s196 = smul.addr %s195, 2
        %s197 = smul.addr %s193, 12
        %s198 = sadd.s32 %s196, %s197
        %s199 = smul.addr %s198, 8
        %s200 = scalar_lea.vmem %s0, %s199
        %s201 = smul.u32 3, %s22
        %v202 = vld [vmem:[%s200] sm:$0xff]
        %v203 = vld [vmem:[%s1] sm:$0x1]
        %v204 = vlaneseq
        %v205 = vshrl.u32 %v204, 7
        %v206 = vsub.s32 0, %v205
        %v207 = vrot.slane %v203, %v206
        %v208 = vmul.f32 %v202, %v207
        %v209 = vadd.f32 %v208, 0.0
        %s210 = scalar_lea.vmem %s200, 16
        %v211 = vld [vmem:[%s210] sm:$0xff]
        %v212 = vld [vmem:[%s1 + $0x1] sm:$0x1]
        %v213 = vlaneseq
        %v214 = vshrl.u32 %v213, 7
        %v215 = vsub.s32 0, %v214
        %v216 = vrot.slane %v212, %v215
        %v217 = vmul.f32 %v211, %v216
        %v218 = vadd.f32 %v209, %v217
        %s219 = scalar_lea.vmem %s200, 32
        %v220 = vld [vmem:[%s219] sm:$0xff]
        %v221 = vld [vmem:[%s1 + $0x2] sm:$0x1]
        %v222 = vlaneseq
        %v223 = vshrl.u32 %v222, 7
        %v224 = vsub.s32 0, %v223
        %v225 = vrot.slane %v221, %v224
        %v226 = vmul.f32 %v220, %v225
        %v227 = vadd.f32 %v218, %v226
        %v228 = vld [vmem:[%s200 + $0x1] sm:$0xff]
        %v229 = vld [vmem:[%s1 + $0x3] sm:$0x1]
        %v230 = vlaneseq
        %v231 = vshrl.u32 %v230, 7
        %v232 = vsub.s32 0, %v231
        %v233 = vrot.slane %v229, %v232
        %v234 = vmul.f32 %v228, %v233
        %v235 = vadd.f32 %v227, %v234
        %v236 = vld [vmem:[%s210 + $0x1] sm:$0xff]
        %v237 = vld [vmem:[%s1 + $0x4] sm:$0x1]
        %v238 = vlaneseq
        %v239 = vshrl.u32 %v238, 7
        %v240 = vsub.s32 0, %v239
        %v241 = vrot.slane %v237, %v240
        %v242 = vmul.f32 %v236, %v241
        %v243 = vadd.f32 %v235, %v242
        %v244 = vld [vmem:[%s219 + $0x1] sm:$0xff]
        %v245 = vld [vmem:[%s1 + $0x5] sm:$0x1]
        %v246 = vlaneseq
        %v247 = vshrl.u32 %v246, 7
        %v248 = vsub.s32 0, %v247
        %v249 = vrot.slane %v245, %v248
        %v250 = vmul.f32 %v244, %v249
        %v251 = vadd.f32 %v243, %v250
        %v252 = vld [vmem:[%s200 + $0x2] sm:$0xff]
        %v253 = vld [vmem:[%s1 + $0x6] sm:$0x1]
        %v254 = vlaneseq
        %v255 = vshrl.u32 %v254, 7
        %v256 = vsub.s32 0, %v255
        %v257 = vrot.slane %v253, %v256
        %v258 = vmul.f32 %v252, %v257
        %v259 = vadd.f32 %v251, %v258
        %v260 = vld [vmem:[%s210 + $0x2] sm:$0xff]
        %v261 = vld [vmem:[%s1 + $0x7] sm:$0x1]
        %v262 = vlaneseq
        %v263 = vshrl.u32 %v262, 7
        %v264 = vsub.s32 0, %v263
        %v265 = vrot.slane %v261, %v264
        %v266 = vmul.f32 %v260, %v265
        %v267 = vadd.f32 %v259, %v266
        %v268 = vld [vmem:[%s219 + $0x2] sm:$0xff]
        %v269 = vld [vmem:[%s1 + $0x8] sm:$0x1]
        %v270 = vlaneseq
        %v271 = vshrl.u32 %v270, 7
        %v272 = vsub.s32 0, %v271
        %v273 = vrot.slane %v269, %v272
        %v274 = vmul.f32 %v268, %v273
        %v275 = vadd.f32 %v267, %v274
        %v276 = vld [vmem:[%s2] sm:$0xff]
        %v277 = vld [vmem:[%s2 + $0x8] sm:$0xff]
        %v278 = vld [vmem:[%s2 + $0x10] sm:$0xff]
        %v279 = vld [vmem:[%s2 + $0x18] sm:$0xff]
        %v280 = vld [vmem:[%s2 + $0x20] sm:$0xff]
        %v281 = vld [vmem:[%s2 + $0x28] sm:$0xff]
        %v282 = vld [vmem:[%s2 + $0x30] sm:$0xff]
        %v283 = vld [vmem:[%s2 + $0x38] sm:$0xff]
        %v284 = vld [vmem:[%s2 + $0x40] sm:$0xff]
        %v285 = vld [vmem:[%s2 + $0x48] sm:$0xff]
        %v286 = vld [vmem:[%s2 + $0x50] sm:$0xff]
        %v287 = vld [vmem:[%s2 + $0x58] sm:$0xff]
        %v288 = vld [vmem:[%s2 + $0x60] sm:$0xff]
        %v289 = vld [vmem:[%s2 + $0x68] sm:$0xff]
        %v290 = vld [vmem:[%s2 + $0x70] sm:$0xff]
        %v291 = vld [vmem:[%s2 + $0x78] sm:$0xff]
        %v292 = vld [vmem:[%s2 + $0x80] sm:$0xff]
        %v293 = vld [vmem:[%s2 + $0x88] sm:$0xff]
        %v294 = vld [vmem:[%s2 + $0x90] sm:$0xff]
        %v295 = vld [vmem:[%s2 + $0x98] sm:$0xff]
        %v296 = vld [vmem:[%s2 + $0xa0] sm:$0xff]
        %v297 = vld [vmem:[%s2 + $0xa8] sm:$0xff]
        %v298 = vld [vmem:[%s2 + $0xb0] sm:$0xff]
        %v299 = vld [vmem:[%s2 + $0xb8] sm:$0xff]
        %v300 = vld [vmem:[%s2 + $0xc0] sm:$0xff]
        %v301 = vld [vmem:[%s2 + $0xc8] sm:$0xff]
        %v302 = vld [vmem:[%s2 + $0xd0] sm:$0xff]
        %v303 = vld [vmem:[%s2 + $0xd8] sm:$0xff]
        %v304 = vld [vmem:[%s2 + $0xe0] sm:$0xff]
        %v305 = vld [vmem:[%s2 + $0xe8] sm:$0xff]
        %v306 = vld [vmem:[%s2 + $0xf0] sm:$0xff]
        %v307 = vld [vmem:[%s2 + $0xf8] sm:$0xff]
        %308 = vmatprep.subr.mxu0 %v277
        %309 = vmatpush1.msra.mxu0 %v276
        %310 = vmatprep.subr.mxu0 %v279
        %311 = vmatpush1.msra.mxu0 %v278
        %312 = vmatprep.subr.mxu0 %v281
        %313 = vmatpush1.msra.mxu0 %v280
        %314 = vmatprep.subr.mxu0 %v283
        %315 = vmatpush1.msra.mxu0 %v282
        %316 = vmatprep.subr.mxu0 %v285
        %317 = vmatpush1.msra.mxu0 %v284
        %318 = vmatprep.subr.mxu0 %v287
        %319 = vmatpush1.msra.mxu0 %v286
        %320 = vmatprep.subr.mxu0 %v289
        %321 = vmatpush1.msra.mxu0 %v288
        %322 = vmatprep.subr.mxu0 %v291
        %323 = vmatpush1.msra.mxu0 %v290
        %324 = vmatprep.subr.mxu0 %v293
        %325 = vmatpush1.msra.mxu0 %v292
        %326 = vmatprep.subr.mxu0 %v295
        %327 = vmatpush1.msra.mxu0 %v294
        %328 = vmatprep.subr.mxu0 %v297
        %329 = vmatpush1.msra.mxu0 %v296
        %330 = vmatprep.subr.mxu0 %v299
        %331 = vmatpush1.msra.mxu0 %v298
        %332 = vmatprep.subr.mxu0 %v301
        %333 = vmatpush1.msra.mxu0 %v300
        %334 = vmatprep.subr.mxu0 %v303
        %335 = vmatpush1.msra.mxu0 %v302
        %336 = vmatprep.subr.mxu0 %v305
        %337 = vmatpush1.msra.mxu0 %v304
        %338 = vmatprep.subr.mxu0 %v307
        %339 = vmatpush1.msra.mxu0 %v306
        %340 = vmatprep.subr.mxu0 0.0
        %341 = vmatpush1.msra.mxu0 0.0
        %342 = vmatprep.subr.mxu0 0.0
        %343 = vmatpush1.msra.mxu0 0.0
        %344 = vmatprep.subr.mxu0 0.0
        %345 = vmatpush1.msra.mxu0 0.0
        %346 = vmatprep.subr.mxu0 0.0
        %347 = vmatpush1.msra.mxu0 0.0
        %348 = vmatprep.subr.mxu0 0.0
        %349 = vmatpush1.msra.mxu0 0.0
        %350 = vmatprep.subr.mxu0 0.0
        %351 = vmatpush1.msra.mxu0 0.0
        %352 = vmatprep.subr.mxu0 0.0
        %353 = vmatpush1.msra.mxu0 0.0
        %354 = vmatprep.subr.mxu0 0.0
        %355 = vmatpush1.msra.mxu0 0.0
        %356 = vmatprep.subr.mxu0 0.0
        %357 = vmatpush1.msra.mxu0 0.0
        %358 = vmatprep.subr.mxu0 0.0
        %359 = vmatpush1.msra.mxu0 0.0
        %360 = vmatprep.subr.mxu0 0.0
        %361 = vmatpush1.msra.mxu0 0.0
        %362 = vmatprep.subr.mxu0 0.0
        %363 = vmatpush1.msra.mxu0 0.0
        %364 = vmatprep.subr.mxu0 0.0
        %365 = vmatpush1.msra.mxu0 0.0
        %366 = vmatprep.subr.mxu0 0.0
        %367 = vmatpush1.msra.mxu0 0.0
        %368 = vmatprep.subr.mxu0 0.0
        %369 = vmatpush1.msra.mxu0 0.0
        %370 = vmatprep.subr.mxu0 0.0
        %371 = vmatpush1.msra.mxu0 0.0
        %372 = vmatprep.mubr.f32.mxu0 0.0
        %373 = vmatmul.mubr.f32.gmra.mrb[0].mxu0 %v275
        %v374 = vpop.f32.mrb[0].mxu0
        %v375 = vadd.f32 0.0, %v374
        %v376 = vpop.f32.mrb[0].mxu0
        %v377 = vadd.f32 0.0, %v376
        %378 = vdwg.mxu0
        %379 = vst [vmem:[%s190] sm:$0xff] %v375
        %380 = vst [vmem:[%s190 + $0x8] sm:$0xff] %v377
        %s381 = sand.u32 %s109, 1
        %s382 = scalar_lea.sflag [#allocation3], %s381
        %s383 = sand.u32 %s109, 1
        %s384 = smul.addr %s383, 16
        %s385 = scalar_lea.vmem [#allocation2], %s384
        // Predicated region
        $region33: #{tpu_custom_call.1} parent=31 // pred_check
          %p386 = pneg %p119
        $region34: #{tpu_custom_call.1} parent=31 // pred_check_branch
          %388 = sbr.rel (%p386) target = $region36
        $region35: #{tpu_custom_call.1} parent=31 // pred_region
          %s390 = ssub.s32 256, 256
          %391 = vsyncadd %s382, %s390
          %s392 = smul.addr %s22, 2
          %s393 = smul.addr %s21, 4
          %s394 = sadd.s32 %s392, %s393
          %s395 = smul.addr %s394, 128
          %s396 = scalar_lea.hbm %s3, %s395
          %s398 = sshll.u32 %s385, 4
          %s399 = int_to_ptr.vmem [resolvable:$true] %s398
          %401 = dma.vmem_to_hbm [thread:$0]  %s399, 256, %s396, %s382
        $region36: #{tpu_custom_call.1} parent=31 // pred_fallthru
          _
      $region32: #{tpu_custom_call.1} parent=5 // pred_fallthru
        _
      %p402 = scmp.le.s32.totalorder 2, %s12
      // Predicated region
      $region37: #{tpu_custom_call.1} parent=5 // pred_check
        %p403 = pneg %p402
      $region38: #{tpu_custom_call.1} parent=5 // pred_check_branch
        %405 = sbr.rel (%p403) target = $region40
      $region39: #{tpu_custom_call.1} parent=5 // pred_region
        %s406 = ssub.s32 %s12, 2
        // Predicated region
        $region41: #{tpu_custom_call.1} parent=39 // pred_check
          %p407 = pneg %p125
        $region42: #{tpu_custom_call.1} parent=39 // pred_check_branch
          %409 = sbr.rel (%p407) target = $region44
        $region43: #{tpu_custom_call.1} parent=39 // pred_region
          %s410 = sand.u32 %s110, 1
          %s411 = scalar_lea.sflag [#allocation3], %s410
          %s412 = sand.u32 %s110, 1
          %s413 = smul.addr %s412, 16
          %s414 = scalar_lea.vmem [#allocation2], %s413
          %415 = dma.done %s411, 256
        $region44: #{tpu_custom_call.1} parent=39 // pred_fallthru
          _
      $region40: #{tpu_custom_call.1} parent=5 // pred_fallthru
        _
    $region6: #{tpu_custom_call.1} parent=1 // loop_footer
      %s16 = sadd.s32 1, %s12
    $region7: #{tpu_custom_call.1} parent=1 // loop_footer_branch
      %11 = sbr.rel target = $region3
    $region8: #{tpu_custom_call.1} parent=1 // loop_exit
      _
    %416 = vsyncpa [#allocation3], 1
    %s417 = scalar_lea.sflag [#allocation3], 1
    %418 = vsyncpa %s417, 1

</llo_original>
